<compile_context>
chip_gen: v5e
topology: v5e:2x2
jax: 0.10.0
libtpu: 0.0.40
codegen_flags: <defaults>
</compile_context>

<pallas_src>
import functools

import jax
import jax.numpy as jnp
from jax.experimental import pallas as pl
from jax.experimental.pallas import tpu as pltpu


# ----------------------------- kernel helpers --------------------------------


def _group_norm(x, nb, H, W, C, groups, gamma_t, beta_t, eps=1e-5):
    """x: (nb*H, W*C) f32 lane-dense. gamma_t/beta_t: (1, W*C) tiled per-channel.

    PyTorch GroupNorm semantics (biased variance). Uses a mean-subtracted
    second pass for the variance (no E[x^2] - mu^2 cancellation).
    """
    if groups == 1:
        # Fully lane-dense path (last dim stays W*C throughout).
        xs = x.reshape(nb, H, W * C)
        mu = jnp.mean(xs, axis=(1, 2), keepdims=True)
        d = xs - mu
        var = jnp.mean(d * d, axis=(1, 2), keepdims=True)
        xn = (d * jax.lax.rsqrt(var + eps)).reshape(nb * H, W * C)
    else:
        Cg = C // groups
        xg = x.reshape(nb, H, W, groups, Cg)
        mu = jnp.mean(xg, axis=(1, 2, 4), keepdims=True)
        d = xg - mu
        var = jnp.mean(d * d, axis=(1, 2, 4), keepdims=True)
        xn = (d * jax.lax.rsqrt(var + eps)).reshape(nb * H, W * C)
    return xn * gamma_t + beta_t


# ----------------------------- kernel -----------------------------------------


def double_conv_kernel(x_ref, w1_ref, b1_ref, g1_ref, be1_ref,
                       w2_ref, b2_ref, g2_ref, be2_ref, out_ref,
                       *, H, W, Cin, Cmid, Cout, groups1, groups2, mxu_dtype):
    NB = x_ref.shape[0]

    def row_patches(x_ld, C):
        """x_ld: (NB, H, W*C) mxu_dtype -> (NB*H, 3*W*C) row patches.

        K ordering is (dy, w, c), matching the block-Toeplitz weight slab.
        Only the H halo needs physical zeros; the W halo is folded into the
        slab (out-of-range taps are zero columns there).
        """
        zrow = jnp.zeros((NB, 1, W * C), mxu_dtype)
        xh = jnp.concatenate([zrow, x_ld, zrow], axis=1)          # (NB, H+2, W*C)
        p = jnp.concatenate([xh[:, 0:H], xh[:, 1:H + 1], xh[:, 2:H + 2]],
                            axis=-1)                               # (NB, H, 3*W*C)
        return p.reshape(NB * H, 3 * W * C)

    # ---- conv1: one lane-dense matmul + bias + ReLU + GroupNorm ----
    x = x_ref[...].astype(mxu_dtype)                               # cast at source
    p1 = row_patches(x, Cin)
    a1 = jnp.dot(p1, w1_ref[...], preferred_element_type=jnp.float32)   # (NB*H, W*Cmid)
    a1 = jnp.maximum(a1 + b1_ref[...], 0.0)
    y1 = _group_norm(a1, NB, H, W, Cmid, groups1, g1_ref[...], be1_ref[...])

    # ---- conv2: same fused structure ----
    p2 = row_patches(y1.reshape(NB, H, W * Cmid).astype(mxu_dtype), Cmid)
    a2 = jnp.dot(p2, w2_ref[...], preferred_element_type=jnp.float32)   # (NB*H, W*Cout)
    a2 = jnp.maximum(a2 + b2_ref[...], 0.0)
    y2 = _group_norm(a2, NB, H, W, Cout, groups2, g2_ref[...], be2_ref[...])

    # ---- lane-dense store (unmasked vst when W*Cout is a multiple of 128) ----
    out_ref[...] = y2.reshape(NB, H, W * Cout).astype(out_ref.dtype)


# ----------------------------- wrapper -----------------------------------------


def _toeplitz_slab(w_hwio, W, dtype):
    """(3,3,Ci,Co) HWIO conv weight -> (3*W*Ci, W*Co) block-Toeplitz slab.

    slab[(dy*W + xc)*Ci + ci, w*Co + co] = w[dy, xc - w + 1, ci, co] inside the
    3-tap band, 0 outside — SAME zero padding in W is folded into the matmul.
    """
    kh, kw, Ci, Co = w_hwio.shape
    S = jnp.zeros((kh, W, Ci, W, Co), jnp.float32)
    for dx in range(kw):
        band = jnp.eye(W, W, k=1 - dx, dtype=jnp.float32)        # [xc, w]
        S = S + jnp.einsum('dio,xw->dxiwo',
                           w_hwio[:, dx].astype(jnp.float32), band)
    return S.reshape(kh * W * Ci, W * Co).astype(dtype)


def _per_sample_bytes(H, W, Cin, Cmid, Cout, mxu_bytes):
    f32 = 4
    io = 2 * H * W * (Cin + Cout) * f32                           # 2x-buffered blocks
    patches = ((H + 2) * W * (Cin + Cmid)
               + 3 * H * W * (Cin + Cmid)) * mxu_bytes            # bf16 temporaries
    acts = 2 * H * W * (Cmid + Cout) * f32                        # f32 matmul/GN temps
    return io + patches + acts


def _pick_batch_block(N, H, W, Cin, Cmid, Cout, mxu_bytes, budget_bytes):
    per = max(1, _per_sample_bytes(H, W, Cin, Cmid, Cout, mxu_bytes))
    nb = max(1, min(N, budget_bytes // per))
    if N >= 2:
        nb = min(nb, N // 2)         # grid >= 2 -> both v7x TensorCores busy
    while N % nb:
        nb -= 1
    return nb


def double_conv(x_nchw, params, *, mxu_dtype=jnp.bfloat16, batch_block=None):
    """PyTorch-equivalent DoubleConv forward. Input/output are NCHW float32.

    params = (w1_hwio, b1, gamma1, beta1, w2_hwio, b2, gamma2, beta2) with
    conv weights in HWIO (3, 3, I, O) layout and per-channel vectors (C,).
    """
    w1, b1, g1, be1, w2, b2, g2, be2 = params
    N, Cin, H, W = x_nchw.shape
    Cmid = w1.shape[-1]
    Cout = w2.shape[-1]
    groups1 = max(1, Cmid // 32)      # matches nn.GroupNorm(max(1, C // 32), C)
    groups2 = max(1, Cout // 32)

    # Block-Toeplitz weight slabs (W folded into the matmul output), pre-cast to
    # the MXU operand dtype in the wrapper (no per-step in-kernel weight cast).
    w1t = _toeplitz_slab(w1, W, mxu_dtype)                        # (3*W*Cin,  W*Cmid)
    w2t = _toeplitz_slab(w2, W, mxu_dtype)                        # (3*W*Cmid, W*Cout)

    # Per-channel vectors tiled to the lane-dense (W*C) layout; kept in f32.
    def tile_wc(v, C):
        return jnp.tile(v.astype(jnp.float32).reshape(1, C), (1, W))

    b1t, g1t, be1t = tile_wc(b1, Cmid), tile_wc(g1, Cmid), tile_wc(be1, Cmid)
    b2t, g2t, be2t = tile_wc(b2, Cout), tile_wc(g2, Cout), tile_wc(be2, Cout)

    # NCHW -> lane-dense (N, H, W*Cin).  No jnp.pad: H halo is built in-kernel,
    # W halo is folded into the Toeplitz slab.
    x = jnp.transpose(x_nchw, (0, 2, 3, 1)).astype(jnp.float32)
    x = x.reshape(N, H, W * Cin)

    mxu_bytes = jnp.dtype(mxu_dtype).itemsize
    try:
        vmem_cap = int(pltpu.get_tpu_info().vmem_capacity_bytes)
    except Exception:
        vmem_cap = 64 * 1024 * 1024                               # v7x floor
    budget = min(vmem_cap // 6, 12 * 1024 * 1024)
    nb = batch_block or _pick_batch_block(N, H, W, Cin, Cmid, Cout,
                                          mxu_bytes, budget)

    est = (nb * _per_sample_bytes(H, W, Cin, Cmid, Cout, mxu_bytes)
           + (w1t.size + w2t.size) * mxu_bytes
           + 6 * W * (Cmid + Cout) * 4)
    vmem_limit = int(min(max(2 * est, 16 * 1024 * 1024), 32 * 1024 * 1024))

    kernel = functools.partial(double_conv_kernel, H=H, W=W, Cin=Cin, Cmid=Cmid,
                               Cout=Cout, groups1=groups1, groups2=groups2,
                               mxu_dtype=mxu_dtype)

    def full(a):
        return pl.BlockSpec(a.shape, lambda n, nd=a.ndim: (0,) * nd)

    out_flat = pl.pallas_call(
        kernel,
        out_shape=jax.ShapeDtypeStruct((N, H, W * Cout), jnp.float32),
        grid_spec=pltpu.PrefetchScalarGridSpec(
            num_scalar_prefetch=0,
            grid=(N // nb,),
            in_specs=[
                pl.BlockSpec((nb, H, W * Cin), lambda n: (n, 0, 0)),
                full(w1t), full(b1t), full(g1t), full(be1t),
                full(w2t), full(b2t), full(g2t), full(be2t),
            ],
            out_specs=pl.BlockSpec((nb, H, W * Cout), lambda n: (n, 0, 0)),
        ),
        compiler_params=pltpu.CompilerParams(
            dimension_semantics=("parallel",),     # batch axis -> both TCs on v7x
            vmem_limit_bytes=vmem_limit),
    )(x, w1t, b1t, g1t, be1t, w2t, b2t, g2t, be2t)

    out_nhwc = out_flat.reshape(N, H, W, Cout)
    return jnp.transpose(out_nhwc, (0, 3, 1, 2))                  # back to NCHW


# ------------------------ pure-JAX reference ------------------------------------


def _ref_forward(x_nchw, params, groups1, groups2):
    w1, b1, g1, be1, w2, b2, g2, be2 = params
    x = jnp.transpose(x_nchw, (0, 2, 3, 1))

    def conv(x, w_hwio, b):
        y = jax.lax.conv_general_dilated(
            x, w_hwio, (1, 1), "SAME",
            dimension_numbers=("NHWC", "HWIO", "NHWC"))
        return y + b.reshape(1, 1, 1, -1)

    def gn(x, G, gamma, beta, eps=1e-5):
        N, H, W, C = x.shape
        xg = x.reshape(N, H, W, G, C // G)
        mu = jnp.mean(xg, axis=(1, 2, 4), keepdims=True)
        var = jnp.mean(jnp.square(xg - mu), axis=(1, 2, 4), keepdims=True)
        xn = ((xg - mu) * jax.lax.rsqrt(var + eps)).reshape(N, H, W, C)
        return xn * gamma.reshape(1, 1, 1, -1) + beta.reshape(1, 1, 1, -1)

    y = gn(jnp.maximum(conv(x, w1, b1), 0.0), groups1, g1, be1)
    y = gn(jnp.maximum(conv(y, w2, b2), 0.0), groups2, g2, be2)
    return jnp.transpose(y, (0, 3, 1, 2))


# ----------------------------- main ----------------------------------------------


if __name__ == "__main__":
    # Shapes consistent with DoubleConv(in_channels=4, out_channels=8).
    N, Cin, H, W = 2, 4, 16, 16
    Cmid = Cout = 8

    key = jax.random.PRNGKey(0)
    ks = jax.random.split(key, 7)

    x = jax.random.normal(ks[0], (N, Cin, H, W), jnp.float32)

    # PyTorch weight layout (O, I, kH, kW) -> HWIO (kH, kW, I, O).
    w1_oihw = 0.1 * jax.random.normal(ks[1], (Cmid, Cin, 3, 3), jnp.float32)
    b1 = 0.1 * jax.random.normal(ks[2], (Cmid,), jnp.float32)
    w2_oihw = 0.1 * jax.random.normal(ks[3], (Cout, Cmid, 3, 3), jnp.float32)
    b2 = 0.1 * jax.random.normal(ks[4], (Cout,), jnp.float32)
    gamma1 = 1.0 + 0.1 * jax.random.normal(ks[5], (Cmid,), jnp.float32)
    beta1 = 0.05 * jnp.arange(Cmid, dtype=jnp.float32)
    gamma2 = 1.0 + 0.1 * jax.random.normal(ks[6], (Cout,), jnp.float32)
    beta2 = -0.05 * jnp.arange(Cout, dtype=jnp.float32)

    w1 = jnp.transpose(w1_oihw, (2, 3, 1, 0))        # (3, 3, Cin, Cmid)
    w2 = jnp.transpose(w2_oihw, (2, 3, 1, 0))        # (3, 3, Cmid, Cout)

    params = (w1, b1, gamma1, beta1, w2, b2, gamma2, beta2)

    ref = jax.block_until_ready(
        _ref_forward(x, params, max(1, Cmid // 32), max(1, Cout // 32)))

    # Strict check: f32 MXU operands (bit-level semantics of the module).
    out_f32 = jax.block_until_ready(
        double_conv(x, params, mxu_dtype=jnp.float32))
    assert out_f32.shape == (N, Cout, H, W), out_f32.shape
    assert jnp.allclose(out_f32, ref, atol=1e-2, rtol=1e-2), (
        float(jnp.max(jnp.abs(out_f32 - ref))))

    # Default path: bf16 MXU operands (full-rate MXU on v6e/v7x), f32 accumulation
    # and f32 elementwise/GroupNorm — looser tolerance for bf16 operand rounding.
    out_bf16 = jax.block_until_ready(double_conv(x, params))
    assert out_bf16.shape == (N, Cout, H, W), out_bf16.shape
    assert jnp.allclose(out_bf16, ref, atol=5e-2, rtol=5e-2), (
        float(jnp.max(jnp.abs(out_bf16 - ref))))

    print("KERNEL_OK")
</pallas_src>

<mosaic_0001>
module attributes {stable_mosaic.version = 11 : i64} {
  func.func @double_conv_kernel(%arg0: i32, %arg1: memref<1x16x64xf32, #tpu.memory_space<vmem>>, %arg2: memref<192x128xf32, #tpu.memory_space<vmem>>, %arg3: memref<1x128xf32, #tpu.memory_space<vmem>>, %arg4: memref<1x128xf32, #tpu.memory_space<vmem>>, %arg5: memref<1x128xf32, #tpu.memory_space<vmem>>, %arg6: memref<384x128xf32, #tpu.memory_space<vmem>>, %arg7: memref<1x128xf32, #tpu.memory_space<vmem>>, %arg8: memref<1x128xf32, #tpu.memory_space<vmem>>, %arg9: memref<1x128xf32, #tpu.memory_space<vmem>>, %arg10: memref<1x16x128xf32, #tpu.memory_space<vmem>>) attributes {dimension_semantics = [#tpu.dimension_semantics<parallel>], iteration_bounds = array<i64: 2>, scalar_prefetch = 0 : i64, scratch_operands = 0 : i64, tpu.core_type = #tpu.core_type<tc>, window_params = [{transform_indices = @transform_0, window_bounds = array<i64: 1, 16, 64>}, {pipeline_mode = #tpu.pipeline_mode<synchronous>, transform_indices = @transform_1, window_bounds = array<i64: 192, 128>}, {pipeline_mode = #tpu.pipeline_mode<synchronous>, transform_indices = @transform_2, window_bounds = array<i64: 1, 128>}, {pipeline_mode = #tpu.pipeline_mode<synchronous>, transform_indices = @transform_3, window_bounds = array<i64: 1, 128>}, {pipeline_mode = #tpu.pipeline_mode<synchronous>, transform_indices = @transform_4, window_bounds = array<i64: 1, 128>}, {pipeline_mode = #tpu.pipeline_mode<synchronous>, transform_indices = @transform_5, window_bounds = array<i64: 384, 128>}, {pipeline_mode = #tpu.pipeline_mode<synchronous>, transform_indices = @transform_6, window_bounds = array<i64: 1, 128>}, {pipeline_mode = #tpu.pipeline_mode<synchronous>, transform_indices = @transform_7, window_bounds = array<i64: 1, 128>}, {pipeline_mode = #tpu.pipeline_mode<synchronous>, transform_indices = @transform_8, window_bounds = array<i64: 1, 128>}, {transform_indices = @transform_9, window_bounds = array<i64: 1, 16, 128>}]} {
    %c0 = arith.constant 0 : index
    %c0_0 = arith.constant 0 : index
    %c0_1 = arith.constant 0 : index
    %0 = vector.load %arg1[%c0, %c0_0, %c0_1] : memref<1x16x64xf32, #tpu.memory_space<vmem>>, vector<1x16x64xf32>
    %cst = arith.constant 0.000000e+00 : f32
    %1 = vector.broadcast %cst : f32 to vector<1x1x64xf32>
    %2 = tpu.concatenate %1, %0, %1 in 1 : vector<1x1x64xf32>, vector<1x16x64xf32>, vector<1x1x64xf32> -> vector<1x18x64xf32>
    %3 = vector.extract_strided_slice %2 {offsets = [0, 0, 0], sizes = [1, 16, 64], strides = [1, 1, 1]} : vector<1x18x64xf32> to vector<1x16x64xf32>
    %4 = vector.extract_strided_slice %2 {offsets = [0, 1, 0], sizes = [1, 16, 64], strides = [1, 1, 1]} : vector<1x18x64xf32> to vector<1x16x64xf32>
    %5 = vector.extract_strided_slice %2 {offsets = [0, 2, 0], sizes = [1, 16, 64], strides = [1, 1, 1]} : vector<1x18x64xf32> to vector<1x16x64xf32>
    %6 = tpu.concatenate %3, %4, %5 in 2 : vector<1x16x64xf32>, vector<1x16x64xf32>, vector<1x16x64xf32> -> vector<1x16x192xf32>
    %7 = vector.shape_cast %6 : vector<1x16x192xf32> to vector<16x192xf32>
    %c0_2 = arith.constant 0 : index
    %c0_3 = arith.constant 0 : index
    %8 = vector.load %arg2[%c0_2, %c0_3] : memref<192x128xf32, #tpu.memory_space<vmem>>, vector<192x128xf32>
    %cst_4 = arith.constant dense<0.000000e+00> : vector<16x128xf32>
    %9 = tpu.matmul %7, %8, %cst_4 {dimension_numbers = #tpu.dot_dimension_numbers<[1], [0], [0], [1], [0, 0, 1, 1], [], []>} : vector<16x192xf32>, vector<192x128xf32>, vector<16x128xf32> -> vector<16x128xf32>
    %c0_5 = arith.constant 0 : index
    %c0_6 = arith.constant 0 : index
    %10 = vector.load %arg3[%c0_5, %c0_6] : memref<1x128xf32, #tpu.memory_space<vmem>>, vector<1x128xf32>
    %11 = vector.broadcast %10 : vector<1x128xf32> to vector<16x128xf32>
    %12 = arith.addf %9, %11 : vector<16x128xf32>
    %cst_7 = arith.constant 0.000000e+00 : f32
    %13 = vector.broadcast %cst_7 : f32 to vector<16x128xf32>
    %14 = arith.maximumf %12, %13 : vector<16x128xf32>
    %c0_8 = arith.constant 0 : index
    %c0_9 = arith.constant 0 : index
    %15 = vector.load %arg4[%c0_8, %c0_9] : memref<1x128xf32, #tpu.memory_space<vmem>>, vector<1x128xf32>
    %c0_10 = arith.constant 0 : index
    %c0_11 = arith.constant 0 : index
    %16 = vector.load %arg5[%c0_10, %c0_11] : memref<1x128xf32, #tpu.memory_space<vmem>>, vector<1x128xf32>
    %17 = vector.shape_cast %14 : vector<16x128xf32> to vector<1x16x128xf32>
    %cst_12 = arith.constant dense<0.000000e+00> : vector<1xf32>
    %18 = vector.multi_reduction <add>, %17, %cst_12 [1, 2] : vector<1x16x128xf32> to vector<1xf32>
    %19 = vector.shape_cast %18 : vector<1xf32> to vector<1x1x1xf32>
    %cst_13 = arith.constant 2.048000e+03 : f32
    %20 = vector.broadcast %cst_13 : f32 to vector<1x1x1xf32>
    %21 = arith.divf %19, %20 : vector<1x1x1xf32>
    %22 = vector.broadcast %21 : vector<1x1x1xf32> to vector<1x16x128xf32>
    %23 = arith.subf %17, %22 : vector<1x16x128xf32>
    %24 = arith.mulf %23, %23 : vector<1x16x128xf32>
    %cst_14 = arith.constant dense<0.000000e+00> : vector<1xf32>
    %25 = vector.multi_reduction <add>, %24, %cst_14 [1, 2] : vector<1x16x128xf32> to vector<1xf32>
    %26 = vector.shape_cast %25 : vector<1xf32> to vector<1x1x1xf32>
    %cst_15 = arith.constant 2.048000e+03 : f32
    %27 = vector.broadcast %cst_15 : f32 to vector<1x1x1xf32>
    %28 = arith.divf %26, %27 : vector<1x1x1xf32>
    %cst_16 = arith.constant 9.99999974E-6 : f32
    %29 = vector.broadcast %cst_16 : f32 to vector<1x1x1xf32>
    %30 = arith.addf %28, %29 : vector<1x1x1xf32>
    %31 = math.rsqrt %30 : vector<1x1x1xf32>
    %32 = vector.broadcast %31 : vector<1x1x1xf32> to vector<1x16x128xf32>
    %33 = arith.mulf %23, %32 : vector<1x16x128xf32>
    %34 = vector.shape_cast %33 : vector<1x16x128xf32> to vector<16x128xf32>
    %35 = vector.broadcast %15 : vector<1x128xf32> to vector<16x128xf32>
    %36 = arith.mulf %34, %35 : vector<16x128xf32>
    %37 = vector.broadcast %16 : vector<1x128xf32> to vector<16x128xf32>
    %38 = arith.addf %36, %37 : vector<16x128xf32>
    %39 = vector.shape_cast %38 : vector<16x128xf32> to vector<1x16x128xf32>
    %cst_17 = arith.constant 0.000000e+00 : f32
    %40 = vector.broadcast %cst_17 : f32 to vector<1x1x128xf32>
    %41 = tpu.concatenate %40, %39, %40 in 1 : vector<1x1x128xf32>, vector<1x16x128xf32>, vector<1x1x128xf32> -> vector<1x18x128xf32>
    %42 = vector.extract_strided_slice %41 {offsets = [0, 0, 0], sizes = [1, 16, 128], strides = [1, 1, 1]} : vector<1x18x128xf32> to vector<1x16x128xf32>
    %43 = vector.extract_strided_slice %41 {offsets = [0, 1, 0], sizes = [1, 16, 128], strides = [1, 1, 1]} : vector<1x18x128xf32> to vector<1x16x128xf32>
    %44 = vector.extract_strided_slice %41 {offsets = [0, 2, 0], sizes = [1, 16, 128], strides = [1, 1, 1]} : vector<1x18x128xf32> to vector<1x16x128xf32>
    %45 = tpu.concatenate %42, %43, %44 in 2 : vector<1x16x128xf32>, vector<1x16x128xf32>, vector<1x16x128xf32> -> vector<1x16x384xf32>
    %46 = vector.shape_cast %45 : vector<1x16x384xf32> to vector<16x384xf32>
    %c0_18 = arith.constant 0 : index
    %c0_19 = arith.constant 0 : index
    %47 = vector.load %arg6[%c0_18, %c0_19] : memref<384x128xf32, #tpu.memory_space<vmem>>, vector<384x128xf32>
    %cst_20 = arith.constant dense<0.000000e+00> : vector<16x128xf32>
    %48 = tpu.matmul %46, %47, %cst_20 {dimension_numbers = #tpu.dot_dimension_numbers<[1], [0], [0], [1], [0, 0, 1, 1], [], []>} : vector<16x384xf32>, vector<384x128xf32>, vector<16x128xf32> -> vector<16x128xf32>
    %c0_21 = arith.constant 0 : index
    %c0_22 = arith.constant 0 : index
    %49 = vector.load %arg7[%c0_21, %c0_22] : memref<1x128xf32, #tpu.memory_space<vmem>>, vector<1x128xf32>
    %50 = vector.broadcast %49 : vector<1x128xf32> to vector<16x128xf32>
    %51 = arith.addf %48, %50 : vector<16x128xf32>
    %cst_23 = arith.constant 0.000000e+00 : f32
    %52 = vector.broadcast %cst_23 : f32 to vector<16x128xf32>
    %53 = arith.maximumf %51, %52 : vector<16x128xf32>
    %c0_24 = arith.constant 0 : index
    %c0_25 = arith.constant 0 : index
    %54 = vector.load %arg8[%c0_24, %c0_25] : memref<1x128xf32, #tpu.memory_space<vmem>>, vector<1x128xf32>
    %c0_26 = arith.constant 0 : index
    %c0_27 = arith.constant 0 : index
    %55 = vector.load %arg9[%c0_26, %c0_27] : memref<1x128xf32, #tpu.memory_space<vmem>>, vector<1x128xf32>
    %56 = vector.shape_cast %53 : vector<16x128xf32> to vector<1x16x128xf32>
    %cst_28 = arith.constant dense<0.000000e+00> : vector<1xf32>
    %57 = vector.multi_reduction <add>, %56, %cst_28 [1, 2] : vector<1x16x128xf32> to vector<1xf32>
    %58 = vector.shape_cast %57 : vector<1xf32> to vector<1x1x1xf32>
    %cst_29 = arith.constant 2.048000e+03 : f32
    %59 = vector.broadcast %cst_29 : f32 to vector<1x1x1xf32>
    %60 = arith.divf %58, %59 : vector<1x1x1xf32>
    %61 = vector.broadcast %60 : vector<1x1x1xf32> to vector<1x16x128xf32>
    %62 = arith.subf %56, %61 : vector<1x16x128xf32>
    %63 = arith.mulf %62, %62 : vector<1x16x128xf32>
    %cst_30 = arith.constant dense<0.000000e+00> : vector<1xf32>
    %64 = vector.multi_reduction <add>, %63, %cst_30 [1, 2] : vector<1x16x128xf32> to vector<1xf32>
    %65 = vector.shape_cast %64 : vector<1xf32> to vector<1x1x1xf32>
    %cst_31 = arith.constant 2.048000e+03 : f32
    %66 = vector.broadcast %cst_31 : f32 to vector<1x1x1xf32>
    %67 = arith.divf %65, %66 : vector<1x1x1xf32>
    %cst_32 = arith.constant 9.99999974E-6 : f32
    %68 = vector.broadcast %cst_32 : f32 to vector<1x1x1xf32>
    %69 = arith.addf %67, %68 : vector<1x1x1xf32>
    %70 = math.rsqrt %69 : vector<1x1x1xf32>
    %71 = vector.broadcast %70 : vector<1x1x1xf32> to vector<1x16x128xf32>
    %72 = arith.mulf %62, %71 : vector<1x16x128xf32>
    %73 = vector.shape_cast %72 : vector<1x16x128xf32> to vector<16x128xf32>
    %74 = vector.broadcast %54 : vector<1x128xf32> to vector<16x128xf32>
    %75 = arith.mulf %73, %74 : vector<16x128xf32>
    %76 = vector.broadcast %55 : vector<1x128xf32> to vector<16x128xf32>
    %77 = arith.addf %75, %76 : vector<16x128xf32>
    %78 = vector.shape_cast %77 : vector<16x128xf32> to vector<1x16x128xf32>
    %c0_33 = arith.constant 0 : index
    %c0_34 = arith.constant 0 : index
    %c0_35 = arith.constant 0 : index
    %79 = vector.load %arg10[%c0_33, %c0_34, %c0_35] : memref<1x16x128xf32, #tpu.memory_space<vmem>>, vector<1x16x128xf32>
    tpu.vector_store %arg10[%c0_33, %c0_34, %c0_35], %78 {strides = array<i32>} : memref<1x16x128xf32, #tpu.memory_space<vmem>>, vector<1x16x128xf32>,
    return
  }
  func.func @transform_0(%arg0: i32) -> (i32, i32, i32) {
    %c0_i32 = arith.constant 0 : i32
    %c0_i32_0 = arith.constant 0 : i32
    %c0_i32_1 = arith.constant 0 : i32
    return %arg0, %c0_i32, %c0_i32_0 : i32, i32, i32
  }
  func.func @transform_1(%arg0: i32) -> (i32, i32) {
    %c0_i32 = arith.constant 0 : i32
    %c0_i32_0 = arith.constant 0 : i32
    %c0_i32_1 = arith.constant 0 : i32
    return %c0_i32, %c0_i32_0 : i32, i32
  }
  func.func @transform_2(%arg0: i32) -> (i32, i32) {
    %c0_i32 = arith.constant 0 : i32
    %c0_i32_0 = arith.constant 0 : i32
    %c0_i32_1 = arith.constant 0 : i32
    return %c0_i32, %c0_i32_0 : i32, i32
  }
  func.func @transform_3(%arg0: i32) -> (i32, i32) {
    %c0_i32 = arith.constant 0 : i32
    %c0_i32_0 = arith.constant 0 : i32
    %c0_i32_1 = arith.constant 0 : i32
    return %c0_i32, %c0_i32_0 : i32, i32
  }
  func.func @transform_4(%arg0: i32) -> (i32, i32) {
    %c0_i32 = arith.constant 0 : i32
    %c0_i32_0 = arith.constant 0 : i32
    %c0_i32_1 = arith.constant 0 : i32
    return %c0_i32, %c0_i32_0 : i32, i32
  }
  func.func @transform_5(%arg0: i32) -> (i32, i32) {
    %c0_i32 = arith.constant 0 : i32
    %c0_i32_0 = arith.constant 0 : i32
    %c0_i32_1 = arith.constant 0 : i32
    return %c0_i32, %c0_i32_0 : i32, i32
  }
  func.func @transform_6(%arg0: i32) -> (i32, i32) {
    %c0_i32 = arith.constant 0 : i32
    %c0_i32_0 = arith.constant 0 : i32
    %c0_i32_1 = arith.constant 0 : i32
    return %c0_i32, %c0_i32_0 : i32, i32
  }
  func.func @transform_7(%arg0: i32) -> (i32, i32) {
    %c0_i32 = arith.constant 0 : i32
    %c0_i32_0 = arith.constant 0 : i32
    %c0_i32_1 = arith.constant 0 : i32
    return %c0_i32, %c0_i32_0 : i32, i32
  }
  func.func @transform_8(%arg0: i32) -> (i32, i32) {
    %c0_i32 = arith.constant 0 : i32
    %c0_i32_0 = arith.constant 0 : i32
    %c0_i32_1 = arith.constant 0 : i32
    return %c0_i32, %c0_i32_0 : i32, i32
  }
  func.func @transform_9(%arg0: i32) -> (i32, i32, i32) {
    %c0_i32 = arith.constant 0 : i32
    %c0_i32_0 = arith.constant 0 : i32
    %c0_i32_1 = arith.constant 0 : i32
    return %arg0, %c0_i32, %c0_i32_0 : i32, i32, i32
  }
}

</mosaic_0001>

<llo_original>
// kernel: tpu_custom_call.1
$region0: #{tpu_custom_call.1}
  #allocation0 [shape = 'u32[]', space=smem, size = 0x4, offset = 0x4, fixed_abs, tag = 'smem constant byte address 0x4 - core index']
  #allocation1 [shape = 'u32[72,128]{1,0:T(1,128)}', space=vmem, size = 0x9000, scoped, tag = 'internal scratch']
  %s0 = inlined_call_operand.hbm [shape: f32[2,16,64], index: 0, kind: input, shape index: {}]
  %s1 = inlined_call_operand.hbm [shape: f32[192,128], index: 1, kind: input, shape index: {}]
  %s2 = inlined_call_operand.vmem [shape: f32[1,128], index: 2, kind: input, shape index: {}]
  %s3 = inlined_call_operand.vmem [shape: f32[1,128], index: 3, kind: input, shape index: {}]
  %s4 = inlined_call_operand.vmem [shape: f32[1,128], index: 4, kind: input, shape index: {}]
  %s5 = inlined_call_operand.hbm [shape: f32[384,128], index: 5, kind: input, shape index: {}]
  %s6 = inlined_call_operand.vmem [shape: f32[1,128], index: 6, kind: input, shape index: {}]
  %s7 = inlined_call_operand.vmem [shape: f32[1,128], index: 7, kind: input, shape index: {}]
  %s8 = inlined_call_operand.vmem [shape: f32[1,128], index: 8, kind: input, shape index: {}]
  %s9 = inlined_call_operand.hbm [shape: f32[2,16,128], index: 9, kind: output, shape index: {}]
  %s10 = sld [smem:[#allocation0]]
  $region81: #{tpu_custom_call.1} parent=0
    _
  %s12 = ssub.s32 1, %s10
  %s13 = scalar_select 0, %s12, %s10
  $region1: #{tpu_custom_call.1} parent=0
    #allocation2 [shape = 'u8[16384]{0}', space=vmem, size = 0x4000, scoped, tag = 'input window, operand 0']
    #allocation3 [shape = 's32[2]{0}', space=sflag, size = 0x8, scoped, tag = 'scoped memory for tpu_custom_call.1']
    #allocation4 [shape = 's32[2]{0}', space=sflag, size = 0x8, scoped, tag = 'scoped memory for tpu_custom_call.1']
    #allocation5 [shape = 'u8[98304]{0}', space=vmem, size = 0x18000, scoped, tag = 'input window, operand 1, single buffered']
    #allocation6 [shape = 's32[1]{0}', space=sflag, size = 0x4, scoped, tag = 'scoped memory for tpu_custom_call.1']
    #allocation7 [shape = 'u8[196608]{0}', space=vmem, size = 0x30000, scoped, tag = 'input window, operand 5, single buffered']
    #allocation8 [shape = 'u8[16384]{0}', space=vmem, size = 0x4000, scoped, tag = 'output window, operand 0']
    %14 = vsyncpa [#allocation3], 0
    %s15 = scalar_lea.sflag [#allocation3], 1
    %16 = vsyncpa %s15, 0
    %17 = vsyncpa [#allocation6], 0
    %18 = vsyncpa [#allocation4], 0
    %s19 = scalar_lea.sflag [#allocation4], 1
    %20 = vsyncpa %s19, 0
    loop: start=0, step=1, limit=4
    $region2: #{tpu_custom_call.1} parent=1 // loop_pre_header
      _
    $region3: #{tpu_custom_call.1} parent=1 // loop_header
      %s22 = sphi 0, %s26
      %p23 = scmp.ge.s32.totalorder %s22, 4
      %s32 = sphi 0, %s34
      %s35 = sphi 0, %s32
      %s36 = sphi 0, %s35
      %s52 = sphi 0, %s36
      %s56 = sphi 0, %s56
      %s58 = sphi 0, %s56
      %s59 = sphi 0, %s58
      %s73 = sphi 0, %s59
      %s77 = sphi 0, %s77
      %s79 = sphi 0, %s77
      %s80 = sphi 0, %s79
      %s94 = sphi 0, %s80
      %s98 = sphi 0, %s98
      %s100 = sphi 0, %s98
      %s101 = sphi 0, %s100
      %s115 = sphi 0, %s101
      %s119 = sphi 0, %s119
      %s121 = sphi 0, %s119
      %s122 = sphi 0, %s121
      %s136 = sphi 0, %s122
      %s140 = sphi 0, %s140
      %s142 = sphi 0, %s140
      %s143 = sphi 0, %s142
      %s157 = sphi 0, %s143
      %s161 = sphi 0, %s161
      %s163 = sphi 0, %s161
      %s164 = sphi 0, %s163
      %s178 = sphi 0, %s164
      %s182 = sphi 0, %s182
      %s184 = sphi 0, %s182
      %s185 = sphi 0, %s184
      %s199 = sphi 0, %s185
      %s203 = sphi 0, %s203
      %s205 = sphi 0, %s203
      %s206 = sphi 0, %s205
      %s220 = sphi 0, %s206
      %s226 = sphi 0, %s228
      %s229 = sphi 0, %s226
      %s230 = sphi 0, %s229
      %s246 = sphi 0, %s230
    $region4: #{tpu_custom_call.1} parent=1 // loop_header_branch
      %25 = sbr.rel (%p23) target = $region8
    $region5: #{tpu_custom_call.1} parent=1 // loop_body
      %s27 = ssub.s32 %s22, 1
      %s28 = ssub.s32 %s22, 2
      %s29 = sadd.s32 %s22, 1
      %s30 = ssub.s32 %s22, %s29
      %p31 = scmp.eq.s32.totalorder %s30, 0
      %s33 = sadd.s32 %s32, 1
      %s34 = scalar_select %p31, %s32, %s33
      %p37 = pneg %p31
      %p38 = scmp.eq.s32.totalorder %s22, 1
      %p39 = por %p37, %p38
      %p40 = scmp.ne.s32.totalorder %s32, %s35
      %p41 = scmp.eq.s32.totalorder %s22, 0
      %p42 = por %p40, %p41
      %p43 = scmp.ne.s32.totalorder %s32, %s35
      %p44 = scmp.eq.s32.totalorder %s27, 1
      %p45 = por %p43, %p44
      %p46 = scmp.ne.s32.totalorder %s35, %s36
      %p47 = scmp.eq.s32.totalorder %s27, 0
      %p48 = por %p46, %p47
      %p49 = scmp.ne.s32.totalorder %s35, %s36
      %p50 = scmp.eq.s32.totalorder %s28, 1
      %p51 = por %p49, %p50
      %p53 = scmp.ne.s32.totalorder %s36, %s52
      %p54 = scmp.eq.s32.totalorder %s28, 0
      %p55 = por %p53, %p54
      %s57 = sadd.s32 %s56, 1
      %p60 = scmp.eq.s32.totalorder %s22, 1
      %p61 = scmp.ne.s32.totalorder %s56, %s58
      %p62 = scmp.eq.s32.totalorder %s22, 0
      %p63 = por %p61, %p62
      %p64 = scmp.ne.s32.totalorder %s56, %s58
      %p65 = scmp.eq.s32.totalorder %s27, 1
      %p66 = por %p64, %p65
      %p67 = scmp.ne.s32.totalorder %s58, %s59
      %p68 = scmp.eq.s32.totalorder %s27, 0
      %p69 = por %p67, %p68
      %p70 = scmp.ne.s32.totalorder %s58, %s59
      %p71 = scmp.eq.s32.totalorder %s28, 1
      %p72 = por %p70, %p71
      %p74 = scmp.ne.s32.totalorder %s59, %s73
      %p75 = scmp.eq.s32.totalorder %s28, 0
      %p76 = por %p74, %p75
      %s78 = sadd.s32 %s77, 1
      %p81 = scmp.eq.s32.totalorder %s22, 1
      %p82 = scmp.ne.s32.totalorder %s77, %s79
      %p83 = scmp.eq.s32.totalorder %s22, 0
      %p84 = por %p82, %p83
      %p85 = scmp.ne.s32.totalorder %s77, %s79
      %p86 = scmp.eq.s32.totalorder %s27, 1
      %p87 = por %p85, %p86
      %p88 = scmp.ne.s32.totalorder %s79, %s80
      %p89 = scmp.eq.s32.totalorder %s27, 0
      %p90 = por %p88, %p89
      %p91 = scmp.ne.s32.totalorder %s79, %s80
      %p92 = scmp.eq.s32.totalorder %s28, 1
      %p93 = por %p91, %p92
      %p95 = scmp.ne.s32.totalorder %s80, %s94
      %p96 = scmp.eq.s32.totalorder %s28, 0
      %p97 = por %p95, %p96
      %s99 = sadd.s32 %s98, 1
      %p102 = scmp.eq.s32.totalorder %s22, 1
      %p103 = scmp.ne.s32.totalorder %s98, %s100
      %p104 = scmp.eq.s32.totalorder %s22, 0
      %p105 = por %p103, %p104
      %p106 = scmp.ne.s32.totalorder %s98, %s100
      %p107 = scmp.eq.s32.totalorder %s27, 1
      %p108 = por %p106, %p107
      %p109 = scmp.ne.s32.totalorder %s100, %s101
      %p110 = scmp.eq.s32.totalorder %s27, 0
      %p111 = por %p109, %p110
      %p112 = scmp.ne.s32.totalorder %s100, %s101
      %p113 = scmp.eq.s32.totalorder %s28, 1
      %p114 = por %p112, %p113
      %p116 = scmp.ne.s32.totalorder %s101, %s115
      %p117 = scmp.eq.s32.totalorder %s28, 0
      %p118 = por %p116, %p117
      %s120 = sadd.s32 %s119, 1
      %p123 = scmp.eq.s32.totalorder %s22, 1
      %p124 = scmp.ne.s32.totalorder %s119, %s121
      %p125 = scmp.eq.s32.totalorder %s22, 0
      %p126 = por %p124, %p125
      %p127 = scmp.ne.s32.totalorder %s119, %s121
      %p128 = scmp.eq.s32.totalorder %s27, 1
      %p129 = por %p127, %p128
      %p130 = scmp.ne.s32.totalorder %s121, %s122
      %p131 = scmp.eq.s32.totalorder %s27, 0
      %p132 = por %p130, %p131
      %p133 = scmp.ne.s32.totalorder %s121, %s122
      %p134 = scmp.eq.s32.totalorder %s28, 1
      %p135 = por %p133, %p134
      %p137 = scmp.ne.s32.totalorder %s122, %s136
      %p138 = scmp.eq.s32.totalorder %s28, 0
      %p139 = por %p137, %p138
      %s141 = sadd.s32 %s140, 1
      %p144 = scmp.eq.s32.totalorder %s22, 1
      %p145 = scmp.ne.s32.totalorder %s140, %s142
      %p146 = scmp.eq.s32.totalorder %s22, 0
      %p147 = por %p145, %p146
      %p148 = scmp.ne.s32.totalorder %s140, %s142
      %p149 = scmp.eq.s32.totalorder %s27, 1
      %p150 = por %p148, %p149
      %p151 = scmp.ne.s32.totalorder %s142, %s143
      %p152 = scmp.eq.s32.totalorder %s27, 0
      %p153 = por %p151, %p152
      %p154 = scmp.ne.s32.totalorder %s142, %s143
      %p155 = scmp.eq.s32.totalorder %s28, 1
      %p156 = por %p154, %p155
      %p158 = scmp.ne.s32.totalorder %s143, %s157
      %p159 = scmp.eq.s32.totalorder %s28, 0
      %p160 = por %p158, %p159
      %s162 = sadd.s32 %s161, 1
      %p165 = scmp.eq.s32.totalorder %s22, 1
      %p166 = scmp.ne.s32.totalorder %s161, %s163
      %p167 = scmp.eq.s32.totalorder %s22, 0
      %p168 = por %p166, %p167
      %p169 = scmp.ne.s32.totalorder %s161, %s163
      %p170 = scmp.eq.s32.totalorder %s27, 1
      %p171 = por %p169, %p170
      %p172 = scmp.ne.s32.totalorder %s163, %s164
      %p173 = scmp.eq.s32.totalorder %s27, 0
      %p174 = por %p172, %p173
      %p175 = scmp.ne.s32.totalorder %s163, %s164
      %p176 = scmp.eq.s32.totalorder %s28, 1
      %p177 = por %p175, %p176
      %p179 = scmp.ne.s32.totalorder %s164, %s178
      %p180 = scmp.eq.s32.totalorder %s28, 0
      %p181 = por %p179, %p180
      %s183 = sadd.s32 %s182, 1
      %p186 = scmp.eq.s32.totalorder %s22, 1
      %p187 = scmp.ne.s32.totalorder %s182, %s184
      %p188 = scmp.eq.s32.totalorder %s22, 0
      %p189 = por %p187, %p188
      %p190 = scmp.ne.s32.totalorder %s182, %s184
      %p191 = scmp.eq.s32.totalorder %s27, 1
      %p192 = por %p190, %p191
      %p193 = scmp.ne.s32.totalorder %s184, %s185
      %p194 = scmp.eq.s32.totalorder %s27, 0
      %p195 = por %p193, %p194
      %p196 = scmp.ne.s32.totalorder %s184, %s185
      %p197 = scmp.eq.s32.totalorder %s28, 1
      %p198 = por %p196, %p197
      %p200 = scmp.ne.s32.totalorder %s185, %s199
      %p201 = scmp.eq.s32.totalorder %s28, 0
      %p202 = por %p200, %p201
      %s204 = sadd.s32 %s203, 1
      %p207 = scmp.eq.s32.totalorder %s22, 1
      %p208 = scmp.ne.s32.totalorder %s203, %s205
      %p209 = scmp.eq.s32.totalorder %s22, 0
      %p210 = por %p208, %p209
      %p211 = scmp.ne.s32.totalorder %s203, %s205
      %p212 = scmp.eq.s32.totalorder %s27, 1
      %p213 = por %p211, %p212
      %p214 = scmp.ne.s32.totalorder %s205, %s206
      %p215 = scmp.eq.s32.totalorder %s27, 0
      %p216 = por %p214, %p215
      %p217 = scmp.ne.s32.totalorder %s205, %s206
      %p218 = scmp.eq.s32.totalorder %s28, 1
      %p219 = por %p217, %p218
      %p221 = scmp.ne.s32.totalorder %s206, %s220
      %p222 = scmp.eq.s32.totalorder %s28, 0
      %p223 = por %p221, %p222
      %s224 = ssub.s32 %s22, %s29
      %p225 = scmp.eq.s32.totalorder %s224, 0
      %s227 = sadd.s32 %s226, 1
      %s228 = scalar_select %p225, %s226, %s227
      %p231 = pneg %p225
      %p232 = scmp.eq.s32.totalorder %s22, 1
      %p233 = por %p231, %p232
      %p234 = scmp.ne.s32.totalorder %s226, %s229
      %p235 = scmp.eq.s32.totalorder %s22, 0
      %p236 = por %p234, %p235
      %p237 = scmp.ne.s32.totalorder %s226, %s229
      %p238 = scmp.eq.s32.totalorder %s27, 1
      %p239 = por %p237, %p238
      %p240 = scmp.ne.s32.totalorder %s229, %s230
      %p241 = scmp.eq.s32.totalorder %s27, 0
      %p242 = por %p240, %p241
      %p243 = scmp.ne.s32.totalorder %s229, %s230
      %p244 = scmp.eq.s32.totalorder %s28, 1
      %p245 = por %p243, %p244
      %p247 = scmp.ne.s32.totalorder %s230, %s246
      %p248 = scmp.eq.s32.totalorder %s28, 0
      %p249 = por %p247, %p248
      %p250 = scmp.le.s32.totalorder 1, %s22
      %p251 = scmp.lt.s32.totalorder %s22, 3
      %p252 = pnand %p250, %p251
      %p253 = pneg %p252
      // Predicated region
      $region9: #{tpu_custom_call.1} parent=5 // pred_check
        _
      $region10: #{tpu_custom_call.1} parent=5 // pred_check_branch
        %255 = sbr.rel (%p252) target = $region12
      $region11: #{tpu_custom_call.1} parent=5 // pred_region
        %s256 = ssub.s32 %s22, 1
        // Predicated region
        $region13: #{tpu_custom_call.1} parent=11 // pred_check
          %p257 = pneg %p69
        $region14: #{tpu_custom_call.1} parent=11 // pred_check_branch
          %259 = sbr.rel (%p257) target = $region16
        $region15: #{tpu_custom_call.1} parent=11 // pred_region
          %261 = vsyncadd [#allocation6], 0
          %s262 = sshll.u32 %s1, 4
          %s263 = int_to_ptr.hbm [resolvable:$true] %s262
          %s264 = sshll.u32 [#allocation5], 4
          %s265 = int_to_ptr.vmem [resolvable:$true] %s264
          %270 = dma.hbm_to_vmem [thread:$0]  %s263, 3072, %s265, [#allocation6], 128, 128, 8
        $region16: #{tpu_custom_call.1} parent=11 // pred_fallthru
          _
        // Predicated region
        $region17: #{tpu_custom_call.1} parent=11 // pred_check
          %p271 = pneg %p90
        $region18: #{tpu_custom_call.1} parent=11 // pred_check_branch
          %273 = sbr.rel (%p271) target = $region20
        $region19: #{tpu_custom_call.1} parent=11 // pred_region
          _
        $region20: #{tpu_custom_call.1} parent=11 // pred_fallthru
          _
        // Predicated region
        $region21: #{tpu_custom_call.1} parent=11 // pred_check
          %p274 = pneg %p111
        $region22: #{tpu_custom_call.1} parent=11 // pred_check_branch
          %276 = sbr.rel (%p274) target = $region24
        $region23: #{tpu_custom_call.1} parent=11 // pred_region
          _
        $region24: #{tpu_custom_call.1} parent=11 // pred_fallthru
          _
        // Predicated region
        $region25: #{tpu_custom_call.1} parent=11 // pred_check
          %p277 = pneg %p132
        $region26: #{tpu_custom_call.1} parent=11 // pred_check_branch
          %279 = sbr.rel (%p277) target = $region28
        $region27: #{tpu_custom_call.1} parent=11 // pred_region
          _
        $region28: #{tpu_custom_call.1} parent=11 // pred_fallthru
          _
        // Predicated region
        $region29: #{tpu_custom_call.1} parent=11 // pred_check
          %p280 = pneg %p153
        $region30: #{tpu_custom_call.1} parent=11 // pred_check_branch
          %282 = sbr.rel (%p280) target = $region32
        $region31: #{tpu_custom_call.1} parent=11 // pred_region
          %284 = vsyncadd [#allocation6], 0
          %s285 = sshll.u32 %s5, 4
          %s286 = int_to_ptr.hbm [resolvable:$true] %s285
          %s287 = sshll.u32 [#allocation7], 4
          %s288 = int_to_ptr.vmem [resolvable:$true] %s287
          %293 = dma.hbm_to_vmem [thread:$0]  %s286, 6144, %s288, [#allocation6], 128, 128, 8
        $region32: #{tpu_custom_call.1} parent=11 // pred_fallthru
          _
        // Predicated region
        $region33: #{tpu_custom_call.1} parent=11 // pred_check
          %p294 = pneg %p174
        $region34: #{tpu_custom_call.1} parent=11 // pred_check_branch
          %296 = sbr.rel (%p294) target = $region36
        $region35: #{tpu_custom_call.1} parent=11 // pred_region
          _
        $region36: #{tpu_custom_call.1} parent=11 // pred_fallthru
          _
        // Predicated region
        $region37: #{tpu_custom_call.1} parent=11 // pred_check
          %p297 = pneg %p195
        $region38: #{tpu_custom_call.1} parent=11 // pred_check_branch
          %299 = sbr.rel (%p297) target = $region40
        $region39: #{tpu_custom_call.1} parent=11 // pred_region
          _
        $region40: #{tpu_custom_call.1} parent=11 // pred_fallthru
          _
        // Predicated region
        $region41: #{tpu_custom_call.1} parent=11 // pred_check
          %p300 = pneg %p216
        $region42: #{tpu_custom_call.1} parent=11 // pred_check_branch
          %302 = sbr.rel (%p300) target = $region44
        $region43: #{tpu_custom_call.1} parent=11 // pred_region
          _
        $region44: #{tpu_custom_call.1} parent=11 // pred_fallthru
          _
      $region12: #{tpu_custom_call.1} parent=5 // pred_fallthru
        _
      %p303 = scmp.lt.s32.totalorder %s22, 2
      // Predicated region
      $region45: #{tpu_custom_call.1} parent=5 // pred_check
        %p304 = pneg %p303
      $region46: #{tpu_custom_call.1} parent=5 // pred_check_branch
        %306 = sbr.rel (%p304) target = $region48
      $region47: #{tpu_custom_call.1} parent=5 // pred_region
        // Predicated region
        $region49: #{tpu_custom_call.1} parent=47 // pred_check
          %p307 = pneg %p42
        $region50: #{tpu_custom_call.1} parent=47 // pred_check_branch
          %309 = sbr.rel (%p307) target = $region52
        $region51: #{tpu_custom_call.1} parent=47 // pred_region
          %s310 = sand.u32 %s32, 1
          %s311 = scalar_lea.sflag [#allocation3], %s310
          %s312 = sand.u32 %s32, 1
          %s313 = smul.addr %s312, 16
          %s314 = scalar_lea.vmem [#allocation2], %s313
          %316 = vsyncadd %s311, 0
          %s317 = smul.addr %s22, 2
          %s318 = smul.addr %s317, 8
          %s319 = scalar_lea.hbm %s0, %s318
          %s320 = sshll.u32 %s319, 4
          %s321 = int_to_ptr.hbm [resolvable:$true] %s320
          %s322 = sshll.u32 %s314, 4
          %s323 = int_to_ptr.vmem [resolvable:$true] %s322
          %328 = dma.hbm_to_vmem [thread:$0]  %s321, 256, %s323, %s311, 128, 128, 8
        $region52: #{tpu_custom_call.1} parent=47 // pred_fallthru
          _
      $region48: #{tpu_custom_call.1} parent=5 // pred_fallthru
        _
      %p329 = scmp.le.s32.totalorder 1, %s22
      %p330 = scmp.lt.s32.totalorder %s22, 3
      %p331 = pnand %p329, %p330
      %p332 = pneg %p331
      // Predicated region
      $region53: #{tpu_custom_call.1} parent=5 // pred_check
        _
      $region54: #{tpu_custom_call.1} parent=5 // pred_check_branch
        %334 = sbr.rel (%p331) target = $region56
      $region55: #{tpu_custom_call.1} parent=5 // pred_region
        %s335 = ssub.s32 %s22, 1
        %s336 = sand.u32 %s35, 1
        %s337 = scalar_lea.sflag [#allocation3], %s336
        %s338 = sand.u32 %s35, 1
        %s339 = smul.addr %s338, 16
        %s340 = scalar_lea.vmem [#allocation2], %s339
        // Predicated region
        $region57: #{tpu_custom_call.1} parent=55 // pred_check
          %p341 = pneg %p48
        $region58: #{tpu_custom_call.1} parent=55 // pred_check_branch
          %343 = sbr.rel (%p341) target = $region60
        $region59: #{tpu_custom_call.1} parent=55 // pred_region
          %345 = dma.done %s337, 256
        $region60: #{tpu_custom_call.1} parent=55 // pred_fallthru
          _
        // Predicated region
        $region61: #{tpu_custom_call.1} parent=55 // pred_check
          %p346 = pneg %p69
        $region62: #{tpu_custom_call.1} parent=55 // pred_check_branch
          %348 = sbr.rel (%p346) target = $region64
        $region63: #{tpu_custom_call.1} parent=55 // pred_region
          %350 = dma.done [#allocation6], 3072
        $region64: #{tpu_custom_call.1} parent=55 // pred_fallthru
          _
        // Predicated region
        $region65: #{tpu_custom_call.1} parent=55 // pred_check
          %p351 = pneg %p153
        $region66: #{tpu_custom_call.1} parent=55 // pred_check_branch
          %353 = sbr.rel (%p351) target = $region68
        $region67: #{tpu_custom_call.1} parent=55 // pred_region
          %355 = dma.done [#allocation6], 6144
        $region68: #{tpu_custom_call.1} parent=55 // pred_fallthru
          _
        %s356 = sand.u32 %s35, 1
        %s357 = scalar_lea.sflag [#allocation3], %s356
        %s358 = sand.u32 %s35, 1
        %s359 = smul.addr %s358, 16
        %s360 = scalar_lea.vmem [#allocation2], %s359
        %p361 = pneg %p48
        %p362 = pneg %p45
        %p363 = pneg %p69
        %p364 = pneg %p66
        %p365 = pneg %p90
        %p366 = pneg %p87
        %p367 = pneg %p111
        %p368 = pneg %p108
        %p369 = pneg %p132
        %p370 = pneg %p129
        %p371 = pneg %p153
        %p372 = pneg %p150
        %p373 = pneg %p174
        %p374 = pneg %p171
        %p375 = pneg %p195
        %p376 = pneg %p192
        %p377 = pneg %p216
        %p378 = pneg %p213
        %p379 = pneg %p242
        %p380 = pneg %p239
        %s381 = sand.u32 %s229, 1
        %s382 = scalar_lea.sflag [#allocation4], %s381
        %s383 = sand.u32 %s229, 1
        %s384 = smul.addr %s383, 16
        %s385 = scalar_lea.vmem [#allocation8], %s384
        %v386 = vld [vmem:[%s340] sm:$0xff]
        %v387 = vld [vmem:[%s340 + $0x8] sm:$0xff]
        %vm390 = vcmask 1040384
        %v391 = vrot.slane %v386, 7
        %v392 = vrot.slane %v387, 7
        %v393 = vsel %vm390, %v391, %v392
        %v397 = vsel %vm390, 0.0, %v391
        %v398 = vsel %vm390, %v392, 0.0
        %vm401 = vcmask 1046528
        %v402 = vrot.slane %v397, 1
        %v403 = vrot.slane %v393, 1
        %v404 = vsel %vm401, %v402, %v403
        %v405 = vrot.slane %v398, 1
        %v406 = vsel %vm401, %v403, %v405
        %407 = vrot.lane.b32.xlu0 %v404, 64
        %v408 = vpop.permute.xlu0 %407
        %409 = vrot.lane.b32.xlu0 %v406, 64
        %v410 = vpop.permute.xlu0 %409
        %vm413 = vcmask 1045504
        %v414 = vrot.slane %v397, 2
        %v415 = vrot.slane %v393, 2
        %v416 = vsel %vm413, %v414, %v415
        %v417 = vrot.slane %v398, 2
        %v418 = vsel %vm413, %v415, %v417
        %vm419 = vcmask 523264
        %v420 = vsel %vm419, %v397, %v408
        %v421 = vsel %vm419, %v393, %v410
        %v422 = vld [vmem:[#allocation5] sm:$0xff]
        %v423 = vld [vmem:[#allocation5 + $0x8] sm:$0xff]
        %v424 = vld [vmem:[#allocation5 + $0x10] sm:$0xff]
        %v425 = vld [vmem:[#allocation5 + $0x18] sm:$0xff]
        %v426 = vld [vmem:[#allocation5 + $0x20] sm:$0xff]
        %v427 = vld [vmem:[#allocation5 + $0x28] sm:$0xff]
        %v428 = vld [vmem:[#allocation5 + $0x30] sm:$0xff]
        %v429 = vld [vmem:[#allocation5 + $0x38] sm:$0xff]
        %v430 = vld [vmem:[#allocation5 + $0x40] sm:$0xff]
        %v431 = vld [vmem:[#allocation5 + $0x48] sm:$0xff]
        %v432 = vld [vmem:[#allocation5 + $0x50] sm:$0xff]
        %v433 = vld [vmem:[#allocation5 + $0x58] sm:$0xff]
        %v434 = vld [vmem:[#allocation5 + $0x60] sm:$0xff]
        %v435 = vld [vmem:[#allocation5 + $0x68] sm:$0xff]
        %v436 = vld [vmem:[#allocation5 + $0x70] sm:$0xff]
        %v437 = vld [vmem:[#allocation5 + $0x78] sm:$0xff]
        %v438 = vld [vmem:[#allocation5 + $0x80] sm:$0xff]
        %v439 = vld [vmem:[#allocation5 + $0x88] sm:$0xff]
        %v440 = vld [vmem:[#allocation5 + $0x90] sm:$0xff]
        %v441 = vld [vmem:[#allocation5 + $0x98] sm:$0xff]
        %v442 = vld [vmem:[#allocation5 + $0xa0] sm:$0xff]
        %v443 = vld [vmem:[#allocation5 + $0xa8] sm:$0xff]
        %v444 = vld [vmem:[#allocation5 + $0xb0] sm:$0xff]
        %v445 = vld [vmem:[#allocation5 + $0xb8] sm:$0xff]
        %v446 = vld [vmem:[%s2] sm:$0x1]
        %v448 = vperm.slane %v446, 0
        %v450 = vsel %vm419, %v416, 0
        %v452 = vsel %vm419, %v418, 0
        %454 = vmatpush.msra.mxu0 %v437
        %455 = vmatpush.msra.mxu0 %v436
        %456 = vmatpush.msra.mxu0 %v435
        %457 = vmatpush.msra.mxu0 %v434
        %458 = vmatpush.msra.mxu0 %v433
        %459 = vmatpush.msra.mxu0 %v432
        %460 = vmatpush.msra.mxu0 %v431
        %461 = vmatpush.msra.mxu0 %v430
        %462 = vmatpush.msra.mxu0 %v429
        %463 = vmatpush.msra.mxu0 %v428
        %464 = vmatpush.msra.mxu0 %v427
        %465 = vmatpush.msra.mxu0 %v426
        %466 = vmatpush.msra.mxu0 %v425
        %467 = vmatpush.msra.mxu0 %v424
        %468 = vmatpush.msra.mxu0 %v423
        %469 = vmatpush.msra.mxu0 %v422
        %470 = vmatmul.f32.gmra.mxu0 %v420
        %v471 = vpop.f32.mrf.mxu0
        %v472 = vadd.f32 %v448, %v471
        %473 = vmatmul.f32.gmra.mxu0 %v421
        %v474 = vpop.f32.mrf.mxu0
        %v475 = vadd.f32 %v448, %v474
        %476 = vdwg.mxu0
        %477 = vmatpush.msra.mxu0 0.0
        %478 = vmatpush.msra.mxu0 0.0
        %479 = vmatpush.msra.mxu0 0.0
        %480 = vmatpush.msra.mxu0 0.0
        %481 = vmatpush.msra.mxu0 0.0
        %482 = vmatpush.msra.mxu0 0.0
        %483 = vmatpush.msra.mxu0 0.0
        %484 = vmatpush.msra.mxu0 0.0
        %485 = vmatpush.msra.mxu0 %v445
        %486 = vmatpush.msra.mxu0 %v444
        %487 = vmatpush.msra.mxu0 %v443
        %488 = vmatpush.msra.mxu0 %v442
        %489 = vmatpush.msra.mxu0 %v441
        %490 = vmatpush.msra.mxu0 %v440
        %491 = vmatpush.msra.mxu0 %v439
        %492 = vmatpush.msra.mxu0 %v438
        %493 = vmatmul.f32.gmra.mxu0 %v450
        %v494 = vpop.f32.mrf.mxu0
        %v495 = vadd.f32 %v472, %v494
        %496 = vmatmul.f32.gmra.mxu0 %v452
        %v497 = vpop.f32.mrf.mxu0
        %v498 = vadd.f32 %v475, %v497
        %499 = vdwg.mxu0
        %v500 = vmax.f32 %v495, 0.0
        %v501 = vmax.f32 %v498, 0.0
        %v502 = vld [vmem:[%s3] sm:$0x1]
        %v503 = vld [vmem:[%s4] sm:$0x1]
        %v504 = vadd.f32 %v500, %v501
        %505 = vadd.xlane.f32.xlu0 %v504
        %v506 = vpop.xlane.xlu0 %505
        %v507 = vrot.slane %v506, 4
        %v508 = vadd.f32 %v506, %v507
        %v509 = vrot.slane %v508, 2
        %v510 = vadd.f32 %v508, %v509
        %v511 = vrot.slane %v510, 1
        %v512 = vadd.f32 %v510, %v511
        %v513 = vrcp.pop 2048.0
        %v514 = vmul.f32 2048.0, %v513
        %v515 = vsub.f32 1.0, %v514
        %v516 = vmul.f32 %v513, %v515
        %v517 = vadd.f32 %v513, %v516
        %vm518 = vweird.f32 %v513
        %v519 = vsel %vm518, %v513, %v517
        %v520 = vmul.f32 %v512, %v519
        %v521 = vsub.f32 %v500, %v520
        %v522 = vsub.f32 %v501, %v520
        %v523 = vmul.f32 %v521, %v521
        %v524 = vmul.f32 %v522, %v522
        %v525 = vadd.f32 %v523, %v524
        %526 = vadd.xlane.f32.xlu0 %v525
        %v527 = vpop.xlane.xlu0 %526
        %v528 = vrot.slane %v527, 4
        %v529 = vadd.f32 %v527, %v528
        %v530 = vrot.slane %v529, 2
        %v531 = vadd.f32 %v529, %v530
        %v532 = vrot.slane %v531, 1
        %v533 = vadd.f32 %v531, %v532
        %v534 = vmul.f32 %v533, %v519
        %v535 = vadd.f32 %v534, 1e-05
        %v536 = vrsqrt.pop %v535
        %v537 = vmul.f32 %v536, %v535
        %v538 = vmul.f32 %v537, %v536
        %v539 = vmul.f32 0.5, %v538
        %v540 = vsub.f32 1.5, %v539
        %v541 = vmul.f32 %v536, %v540
        %vm542 = vweird.f32 %v535
        %vm543 = vweird.f32 %v536
        %vm544 = vmor %vm542, %vm543
        %v545 = vsel %vm544, %v536, %v541
        %v546 = vmul.f32 %v521, %v545
        %v547 = vmul.f32 %v522, %v545
        %v549 = vperm.slane %v502, 0
        %v551 = vmul.f32 %v546, %v549
        %v552 = vmul.f32 %v547, %v549
        %v554 = vperm.slane %v503, 0
        %v556 = vadd.f32 %v551, %v554
        %v557 = vadd.f32 %v552, %v554
        %v560 = vrot.slane %v556, 7
        %v561 = vrot.slane %v557, 7
        %v562 = vsel %vm390, %v560, %v561
        %v566 = vsel %vm390, 0.0, %v560
        %v567 = vsel %vm390, %v561, 0.0
        %v570 = vrot.slane %v566, 1
        %v571 = vrot.slane %v562, 1
        %v572 = vsel %vm401, %v570, %v571
        %v573 = vrot.slane %v567, 1
        %v574 = vsel %vm401, %v571, %v573
        %v577 = vrot.slane %v566, 2
        %v578 = vrot.slane %v562, 2
        %v579 = vsel %vm413, %v577, %v578
        %v580 = vrot.slane %v567, 2
        %v581 = vsel %vm413, %v578, %v580
        %v584 = vld [vmem:[#allocation7] sm:$0xff]
        %v585 = vld [vmem:[#allocation7 + $0x8] sm:$0xff]
        %v586 = vld [vmem:[#allocation7 + $0x10] sm:$0xff]
        %v587 = vld [vmem:[#allocation7 + $0x18] sm:$0xff]
        %v588 = vld [vmem:[#allocation7 + $0x20] sm:$0xff]
        %v589 = vld [vmem:[#allocation7 + $0x28] sm:$0xff]
        %v590 = vld [vmem:[#allocation7 + $0x30] sm:$0xff]
        %v591 = vld [vmem:[#allocation7 + $0x38] sm:$0xff]
        %v592 = vld [vmem:[#allocation7 + $0x40] sm:$0xff]
        %v593 = vld [vmem:[#allocation7 + $0x48] sm:$0xff]
        %v594 = vld [vmem:[#allocation7 + $0x50] sm:$0xff]
        %v595 = vld [vmem:[#allocation7 + $0x58] sm:$0xff]
        %v596 = vld [vmem:[#allocation7 + $0x60] sm:$0xff]
        %v597 = vld [vmem:[#allocation7 + $0x68] sm:$0xff]
        %v598 = vld [vmem:[#allocation7 + $0x70] sm:$0xff]
        %v599 = vld [vmem:[#allocation7 + $0x78] sm:$0xff]
        %v600 = vld [vmem:[#allocation7 + $0x80] sm:$0xff]
        %v601 = vld [vmem:[#allocation7 + $0x88] sm:$0xff]
        %v602 = vld [vmem:[#allocation7 + $0x90] sm:$0xff]
        %v603 = vld [vmem:[#allocation7 + $0x98] sm:$0xff]
        %v604 = vld [vmem:[#allocation7 + $0xa0] sm:$0xff]
        %v605 = vld [vmem:[#allocation7 + $0xa8] sm:$0xff]
        %v606 = vld [vmem:[#allocation7 + $0xb0] sm:$0xff]
        %v607 = vld [vmem:[#allocation7 + $0xb8] sm:$0xff]
        %v608 = vld [vmem:[#allocation7 + $0xc0] sm:$0xff]
        %v609 = vld [vmem:[#allocation7 + $0xc8] sm:$0xff]
        %v610 = vld [vmem:[#allocation7 + $0xd0] sm:$0xff]
        %v611 = vld [vmem:[#allocation7 + $0xd8] sm:$0xff]
        %v612 = vld [vmem:[#allocation7 + $0xe0] sm:$0xff]
        %v613 = vld [vmem:[#allocation7 + $0xe8] sm:$0xff]
        %v614 = vld [vmem:[#allocation7 + $0xf0] sm:$0xff]
        %v615 = vld [vmem:[#allocation7 + $0xf8] sm:$0xff]
        %v616 = vld [vmem:[#allocation7 + $0x100] sm:$0xff]
        %v617 = vld [vmem:[#allocation7 + $0x108] sm:$0xff]
        %v618 = vld [vmem:[#allocation7 + $0x110] sm:$0xff]
        %v619 = vld [vmem:[#allocation7 + $0x118] sm:$0xff]
        %v620 = vld [vmem:[#allocation7 + $0x120] sm:$0xff]
        %v621 = vld [vmem:[#allocation7 + $0x128] sm:$0xff]
        %v622 = vld [vmem:[#allocation7 + $0x130] sm:$0xff]
        %v623 = vld [vmem:[#allocation7 + $0x138] sm:$0xff]
        %v624 = vld [vmem:[#allocation7 + $0x140] sm:$0xff]
        %v625 = vld [vmem:[#allocation7 + $0x148] sm:$0xff]
        %v626 = vld [vmem:[#allocation7 + $0x150] sm:$0xff]
        %v627 = vld [vmem:[#allocation7 + $0x158] sm:$0xff]
        %v628 = vld [vmem:[#allocation7 + $0x160] sm:$0xff]
        %v629 = vld [vmem:[#allocation7 + $0x168] sm:$0xff]
        %v630 = vld [vmem:[#allocation7 + $0x170] sm:$0xff]
        %v631 = vld [vmem:[#allocation7 + $0x178] sm:$0xff]
        %v632 = vld [vmem:[%s6] sm:$0x1]
        %v634 = vperm.slane %v632, 0
        %636 = vmatpush.msra.mxu0 %v599
        %637 = vmatpush.msra.mxu0 %v598
        %638 = vmatpush.msra.mxu0 %v597
        %639 = vmatpush.msra.mxu0 %v596
        %640 = vmatpush.msra.mxu0 %v595
        %641 = vmatpush.msra.mxu0 %v594
        %642 = vmatpush.msra.mxu0 %v593
        %643 = vmatpush.msra.mxu0 %v592
        %644 = vmatpush.msra.mxu0 %v591
        %645 = vmatpush.msra.mxu0 %v590
        %646 = vmatpush.msra.mxu0 %v589
        %647 = vmatpush.msra.mxu0 %v588
        %648 = vmatpush.msra.mxu0 %v587
        %649 = vmatpush.msra.mxu0 %v586
        %650 = vmatpush.msra.mxu0 %v585
        %651 = vmatpush.msra.mxu0 %v584
        %652 = vmatmul.f32.gmra.mxu0 %v566
        %v653 = vpop.f32.mrf.mxu0
        %v654 = vadd.f32 %v634, %v653
        %655 = vmatmul.f32.gmra.mxu0 %v562
        %v656 = vpop.f32.mrf.mxu0
        %v657 = vadd.f32 %v634, %v656
        %658 = vdwg.mxu0
        %659 = vmatpush.msra.mxu0 %v615
        %660 = vmatpush.msra.mxu0 %v614
        %661 = vmatpush.msra.mxu0 %v613
        %662 = vmatpush.msra.mxu0 %v612
        %663 = vmatpush.msra.mxu0 %v611
        %664 = vmatpush.msra.mxu0 %v610
        %665 = vmatpush.msra.mxu0 %v609
        %666 = vmatpush.msra.mxu0 %v608
        %667 = vmatpush.msra.mxu0 %v607
        %668 = vmatpush.msra.mxu0 %v606
        %669 = vmatpush.msra.mxu0 %v605
        %670 = vmatpush.msra.mxu0 %v604
        %671 = vmatpush.msra.mxu0 %v603
        %672 = vmatpush.msra.mxu0 %v602
        %673 = vmatpush.msra.mxu0 %v601
        %674 = vmatpush.msra.mxu0 %v600
        %675 = vmatmul.f32.gmra.mxu0 %v572
        %v676 = vpop.f32.mrf.mxu0
        %v677 = vadd.f32 %v654, %v676
        %678 = vmatmul.f32.gmra.mxu0 %v574
        %v679 = vpop.f32.mrf.mxu0
        %v680 = vadd.f32 %v657, %v679
        %681 = vdwg.mxu0
        %682 = vmatpush.msra.mxu0 %v631
        %683 = vmatpush.msra.mxu0 %v630
        %684 = vmatpush.msra.mxu0 %v629
        %685 = vmatpush.msra.mxu0 %v628
        %686 = vmatpush.msra.mxu0 %v627
        %687 = vmatpush.msra.mxu0 %v626
        %688 = vmatpush.msra.mxu0 %v625
        %689 = vmatpush.msra.mxu0 %v624
        %690 = vmatpush.msra.mxu0 %v623
        %691 = vmatpush.msra.mxu0 %v622
        %692 = vmatpush.msra.mxu0 %v621
        %693 = vmatpush.msra.mxu0 %v620
        %694 = vmatpush.msra.mxu0 %v619
        %695 = vmatpush.msra.mxu0 %v618
        %696 = vmatpush.msra.mxu0 %v617
        %697 = vmatpush.msra.mxu0 %v616
        %698 = vmatmul.f32.gmra.mxu0 %v579
        %v699 = vpop.f32.mrf.mxu0
        %v700 = vadd.f32 %v677, %v699
        %701 = vmatmul.f32.gmra.mxu0 %v581
        %v702 = vpop.f32.mrf.mxu0
        %v703 = vadd.f32 %v680, %v702
        %704 = vdwg.mxu0
        %v705 = vmax.f32 %v700, 0.0
        %v706 = vmax.f32 %v703, 0.0
        %v707 = vld [vmem:[%s7] sm:$0x1]
        %v708 = vld [vmem:[%s8] sm:$0x1]
        %v709 = vadd.f32 %v705, %v706
        %710 = vadd.xlane.f32.xlu0 %v709
        %v711 = vpop.xlane.xlu0 %710
        %v712 = vrot.slane %v711, 4
        %v713 = vadd.f32 %v711, %v712
        %v714 = vrot.slane %v713, 2
        %v715 = vadd.f32 %v713, %v714
        %v716 = vrot.slane %v715, 1
        %v717 = vadd.f32 %v715, %v716
        %v718 = vmul.f32 %v717, %v519
        %v719 = vsub.f32 %v705, %v718
        %v720 = vsub.f32 %v706, %v718
        %v721 = vmul.f32 %v719, %v719
        %v722 = vmul.f32 %v720, %v720
        %v723 = vadd.f32 %v721, %v722
        %724 = vadd.xlane.f32.xlu0 %v723
        %v725 = vpop.xlane.xlu0 %724
        %v726 = vrot.slane %v725, 4
        %v727 = vadd.f32 %v725, %v726
        %v728 = vrot.slane %v727, 2
        %v729 = vadd.f32 %v727, %v728
        %v730 = vrot.slane %v729, 1
        %v731 = vadd.f32 %v729, %v730
        %v732 = vmul.f32 %v731, %v519
        %v733 = vadd.f32 %v732, 1e-05
        %v734 = vrsqrt.pop %v733
        %v735 = vmul.f32 %v734, %v733
        %v736 = vmul.f32 %v735, %v734
        %v737 = vmul.f32 0.5, %v736
        %v738 = vsub.f32 1.5, %v737
        %v739 = vmul.f32 %v734, %v738
        %vm740 = vweird.f32 %v733
        %vm741 = vweird.f32 %v734
        %vm742 = vmor %vm740, %vm741
        %v743 = vsel %vm742, %v734, %v739
        %v744 = vmul.f32 %v719, %v743
        %v745 = vmul.f32 %v720, %v743
        %v747 = vperm.slane %v707, 0
        %v749 = vmul.f32 %v744, %v747
        %v750 = vmul.f32 %v745, %v747
        %v752 = vperm.slane %v708, 0
        %v754 = vadd.f32 %v749, %v752
        %v755 = vadd.f32 %v750, %v752
        %756 = vst [vmem:[%s385] sm:$0xff] %v754
        %757 = vst [vmem:[%s385 + $0x8] sm:$0xff] %v755
        %s758 = sand.u32 %s229, 1
        %s759 = scalar_lea.sflag [#allocation4], %s758
        %s760 = sand.u32 %s229, 1
        %s761 = smul.addr %s760, 16
        %s762 = scalar_lea.vmem [#allocation8], %s761
        // Predicated region
        $region69: #{tpu_custom_call.1} parent=55 // pred_check
          %p763 = pneg %p239
        $region70: #{tpu_custom_call.1} parent=55 // pred_check_branch
          %765 = sbr.rel (%p763) target = $region72
        $region71: #{tpu_custom_call.1} parent=55 // pred_region
          %767 = vsyncadd %s759, 0
          %s768 = smul.addr %s27, 2
          %s769 = smul.addr %s768, 8
          %s770 = scalar_lea.hbm %s9, %s769
          %s771 = sshll.u32 %s762, 4
          %s772 = int_to_ptr.vmem [resolvable:$true] %s771
          %s773 = sshll.u32 %s770, 4
          %s774 = int_to_ptr.hbm [resolvable:$true] %s773
          %779 = dma.vmem_to_hbm [thread:$0]  %s772, 256, %s774, %s759, 128, 128, 8
        $region72: #{tpu_custom_call.1} parent=55 // pred_fallthru
          _
      $region56: #{tpu_custom_call.1} parent=5 // pred_fallthru
        _
      %p780 = scmp.le.s32.totalorder 2, %s22
      // Predicated region
      $region73: #{tpu_custom_call.1} parent=5 // pred_check
        %p781 = pneg %p780
      $region74: #{tpu_custom_call.1} parent=5 // pred_check_branch
        %783 = sbr.rel (%p781) target = $region76
      $region75: #{tpu_custom_call.1} parent=5 // pred_region
        %s784 = ssub.s32 %s22, 2
        // Predicated region
        $region77: #{tpu_custom_call.1} parent=75 // pred_check
          %p785 = pneg %p245
        $region78: #{tpu_custom_call.1} parent=75 // pred_check_branch
          %787 = sbr.rel (%p785) target = $region80
        $region79: #{tpu_custom_call.1} parent=75 // pred_region
          %s788 = sand.u32 %s230, 1
          %s789 = scalar_lea.sflag [#allocation4], %s788
          %s790 = sand.u32 %s230, 1
          %s791 = smul.addr %s790, 16
          %s792 = scalar_lea.vmem [#allocation8], %s791
          %794 = dma.done %s789, 256
        $region80: #{tpu_custom_call.1} parent=75 // pred_fallthru
          _
      $region76: #{tpu_custom_call.1} parent=5 // pred_fallthru
        _
    $region6: #{tpu_custom_call.1} parent=1 // loop_footer
      %s26 = sadd.s32 1, %s22
    $region7: #{tpu_custom_call.1} parent=1 // loop_footer_branch
      %21 = sbr.rel target = $region3
    $region8: #{tpu_custom_call.1} parent=1 // loop_exit
      _
    %795 = vsyncpa [#allocation3], 1
    %s796 = scalar_lea.sflag [#allocation3], 1
    %797 = vsyncpa %s796, 1
    %798 = vsyncpa [#allocation6], 1
    %799 = vsyncpa [#allocation4], 1
    %s800 = scalar_lea.sflag [#allocation4], 1
    %801 = vsyncpa %s800, 1

</llo_original>
